<compile_context>
chip_gen: v5e
topology: v5e:2x2
jax: 0.10.0
libtpu: 0.0.40
codegen_flags: <defaults>
</compile_context>

<pallas_src>
import functools

import numpy as np

import jax
import jax.numpy as jnp
from jax.experimental import pallas as pl
from jax.experimental.pallas import tpu as pltpu


# ----------------------------------------------------------------------------
# Fused kernel: multi-level bilinear sampling + collapsed MLP head,
# one batch image per grid step.
# ----------------------------------------------------------------------------
def _fused_sample_read_kernel(*refs, res_hw, level_res, C):
    # refs = (pts, coords_0..coords_{R-1}, feat_0..feat_{L-1}, wc, bc, out)
    #   pts_ref:      (1, P, 2)          points in [0, 1], f32
    #   coords_ref_r: (2, H_r*W_r)       [rowf; colf] pixel grid, f32 constant
    #   feat_ref_l:   (1, C, H_l*W_l)    one feature level, NCHW-flattened, f32
    #   wc_ref:       (L*C, n_out_pad)   collapsed head weight, bf16
    #   bc_ref:       (1, n_out_pad)     collapsed head bias, f32
    #   out_ref:      (1, P, n_out_pad)  padded logits, f32
    n_res = len(res_hw)
    L = len(level_res)
    pts_ref = refs[0]
    coords_refs = refs[1:1 + n_res]
    feat_refs = refs[1 + n_res:1 + n_res + L]
    wc_ref = refs[1 + n_res + L]
    bc_ref = refs[2 + n_res + L]
    out_ref = refs[-1]

    pts = pts_ref[0]                                    # (P, 2)
    x = pts[:, 0:1]                                     # (P, 1)
    y = pts[:, 1:2]                                     # (P, 1)
    wc = wc_ref[...]                                    # (L*C, n_out_pad) bf16

    # Tent weights reproduce F.grid_sample(mode='bilinear', padding='zeros',
    # align_corners=True) after the module's p*2-1 mapping: ix = x*(W-1).
    # Built once per unique (H, W) resolution, in f32 on the VPU (v5e-safe).
    w_cache = [None] * n_res
    acc = None
    for l in range(L):
        r = level_res[l]
        if w_cache[r] is None:
            H, W = res_hw[r]
            rc = coords_refs[r][...]                    # (2, HW) f32
            rowf = rc[0:1, :]                           # (1, HW)
            colf = rc[1:2, :]                           # (1, HW)
            ix = x * float(W - 1)                       # (P, 1)
            iy = y * float(H - 1)                       # (P, 1)
            wx = jnp.maximum(0.0, 1.0 - jnp.abs(ix - colf))   # (P, HW)
            wy = jnp.maximum(0.0, 1.0 - jnp.abs(iy - rowf))   # (P, HW)
            # TODO(synk): keep this operand f32 if bit-level parity with the
            # torch f32 grid_sample is required (costs 3-pass f32 MXU).
            w_cache[r] = (wx * wy).astype(jnp.bfloat16)       # (P, HW) bf16
        w2d = w_cache[r]                                      # (P, HW)  bf16
        feat = feat_refs[l][0].astype(jnp.bfloat16)           # (C, HW)  bf16

        # sampled features of this level: contract on HW (rhs transposed),
        # f32 accumulation on the MXU.
        s = jax.lax.dot_general(
            w2d, feat, (((1,), (1,)), ((), ())),
            preferred_element_type=jnp.float32)               # (P, C) f32

        # fold straight into the collapsed head: x @ Wc == sum_l s_l @ Wc_l.
        # No concatenate, no narrow 32-lane intermediate store.
        part = jnp.dot(s.astype(jnp.bfloat16),
                       wc[l * C:(l + 1) * C, :],
                       preferred_element_type=jnp.float32)    # (P, n_out) f32
        acc = part if acc is None else acc + part

    out_ref[0] = (acc + bc_ref[...]).astype(out_ref.dtype)    # lane-dense store


def fused_sample_read(points, coords, feats_flat, wc_bf16, bc_pad,
                      res_hw, level_res, C):
    """points: [N,P,2] f32; feats_flat: list of [N,C,H*W] f32 -> [N,P,n_out_pad]."""
    N, P, _ = points.shape
    L = len(feats_flat)
    n_out_pad = wc_bf16.shape[1]

    kernel = functools.partial(
        _fused_sample_read_kernel,
        res_hw=tuple(res_hw), level_res=tuple(level_res), C=C)

    in_specs = [pl.BlockSpec((1, P, 2), lambda b: (b, 0, 0))]
    for c in coords:
        in_specs.append(pl.BlockSpec(c.shape, lambda b: (0, 0)))
    for f in feats_flat:
        hw = f.shape[2]
        in_specs.append(pl.BlockSpec((1, C, hw), lambda b: (b, 0, 0)))
    in_specs.append(pl.BlockSpec(wc_bf16.shape, lambda b: (0, 0)))
    in_specs.append(pl.BlockSpec(bc_pad.shape, lambda b: (0, 0)))

    # Advisory cost + right-sized VMEM limit derived from the real block set
    # (v7x has only 64 MiB VMEM per TensorCore).
    flops = 0
    bytes_accessed = int(points.size) * 4 + N * P * n_out_pad * 4
    bytes_accessed += int(wc_bf16.size) * 2 + int(bc_pad.size) * 4
    block_bytes = P * 2 * 4 + P * n_out_pad * 4
    block_bytes += int(wc_bf16.size) * 2 + int(bc_pad.size) * 4
    for c in coords:
        bytes_accessed += int(c.size) * 4
        block_bytes += int(c.size) * 4
    for f in feats_flat:
        hw = f.shape[2]
        flops += N * (2 * P * hw * C + 2 * P * C * n_out_pad)
        bytes_accessed += int(f.size) * 4
        block_bytes += C * hw * 4
    vmem_limit = int(min(64 * 1024 * 1024,
                         max(8 * 1024 * 1024, 4 * block_bytes)))

    return pl.pallas_call(
        kernel,
        grid=(N,),
        in_specs=in_specs,
        out_specs=pl.BlockSpec((1, P, n_out_pad), lambda b: (b, 0, 0)),
        out_shape=jax.ShapeDtypeStruct((N, P, n_out_pad), jnp.float32),
        compiler_params=pltpu.CompilerParams(
            dimension_semantics=("parallel",),       # v7x: one image per TC
            vmem_limit_bytes=vmem_limit),
        cost_estimate=pl.CostEstimate(
            flops=flops, transcendentals=0, bytes_accessed=bytes_accessed),
    )(points, *coords, *feats_flat, wc_bf16, bc_pad)


# ----------------------------------------------------------------------------
# Forward pass (layout glue in plain JAX, all compute in the fused kernel)
# ----------------------------------------------------------------------------
def rah_read_forward(mlvl_feats_nchw, padding_reference_points, num_ins,
                     params):
    # padding_reference_points: [N, n, t, 2]; unsqueeze(-2) => p = 1
    N, n, t, _ = padding_reference_points.shape
    P = n * t
    points = padding_reference_points.reshape(N, P, 2)
    C = mlvl_feats_nchw[0].shape[1]

    level_hw = [(f.shape[2], f.shape[3]) for f in mlvl_feats_nchw]
    res_hw, level_res = [], []
    for hw in level_hw:
        if hw not in res_hw:
            res_hw.append(hw)
        level_res.append(res_hw.index(hw))

    # tiny per-resolution pixel-grid constants (no int div/mod in the kernel)
    coords = []
    for (H, W) in res_hw:
        rows, cols = np.divmod(np.arange(H * W, dtype=np.int64), W)
        coords.append(jnp.asarray(
            np.stack([rows, cols]).astype(np.float32)))      # (2, H*W)

    # NCHW -> (N, C, H*W) is a free reshape: no transpose / cast HBM round trip
    feats_flat = [f.reshape(N, C, hw[0] * hw[1])
                  for f, hw in zip(mlvl_feats_nchw, level_hw)]

    logits_pad = fused_sample_read(points, coords, feats_flat,
                                   params["wc_bf16"], params["bc_pad"],
                                   res_hw, level_res, C)      # (N, P, pad)
    logits = logits_pad.reshape(N, n, t, -1)

    # TODO(synk): num_ins-dependent output shape is dynamic in PyTorch; here
    # num_ins is static Python ints and the selection is glue on tiny logits.
    logits = jnp.concatenate(
        [logits[i, :num_ins[i]] for i in range(N)], axis=0)   # (M, t, pad)
    return logits[..., :params["num_classes"]]


def init_params(key, embed_dims, num_classes):
    """Deterministic synthetic init; shapes follow the nn.Linear layers."""
    k1, k2, k3, k4 = jax.random.split(key, 4)
    w1 = jax.random.normal(k1, (embed_dims, embed_dims * 4), jnp.float32) * 0.02
    b1 = jax.random.normal(k2, (embed_dims,), jnp.float32) * 0.02
    w2 = jax.random.normal(k3, (num_classes, embed_dims), jnp.float32) * 0.02
    b2 = jax.random.normal(k4, (num_classes,), jnp.float32) * 0.02
    # Collapse the two bias-only Linears (exact: no nonlinearity in between):
    #   logits = x @ (W1.T @ W2.T) + (b1 @ W2.T + b2)
    wc = w1.T @ w2.T                                   # (4E, n_cls) f32
    bc = b1 @ w2.T + b2                                # (n_cls,)
    n_out_pad = max(128, ((num_classes + 127) // 128) * 128)  # lane-dense out
    wc_pad = jnp.zeros((embed_dims * 4, n_out_pad), jnp.float32)
    wc_pad = wc_pad.at[:, :num_classes].set(wc)
    bc_pad = jnp.zeros((n_out_pad,), jnp.float32).at[:num_classes].set(bc)
    return {"wc_bf16": wc_pad.astype(jnp.bfloat16),
            "bc_pad": bc_pad.reshape(1, -1),
            "num_classes": num_classes}


if __name__ == "__main__":
    embed_dims = 32
    num_classes = 10
    N, n, t = 2, 4, 8              # batch, max instances, seq length (p = 1)
    num_levels = 4                 # mlvl_fuse expects embed_dims * 4 inputs
    spatial = [16, 16, 8, 8]       # per-level H = W

    key = jax.random.PRNGKey(0)
    keys = jax.random.split(key, num_levels + 2)

    mlvl_feats = [
        jax.random.normal(keys[l], (N, embed_dims, s, s), jnp.float32)
        for l, s in enumerate(spatial)
    ]
    padding_reference_points = jax.random.uniform(
        keys[num_levels], (N, n, t, 2), jnp.float32)
    params = init_params(keys[num_levels + 1], embed_dims, num_classes)
    num_ins = [3, 2]               # valid instances per image (static)

    decode_logits = rah_read_forward(
        mlvl_feats, padding_reference_points, num_ins, params)
    jax.block_until_ready(decode_logits)
    assert decode_logits.shape == (sum(num_ins), t, num_classes)
    print("KERNEL_OK")
</pallas_src>

<mosaic_0001>
module attributes {stable_mosaic.version = 11 : i64} {
  func.func @_fused_sample_read_kernel(%arg0: i32, %arg1: memref<1x32x2xf32, #tpu.memory_space<vmem>>, %arg2: memref<2x256xf32, #tpu.memory_space<vmem>>, %arg3: memref<2x64xf32, #tpu.memory_space<vmem>>, %arg4: memref<1x32x256xf32, #tpu.memory_space<vmem>>, %arg5: memref<1x32x256xf32, #tpu.memory_space<vmem>>, %arg6: memref<1x32x64xf32, #tpu.memory_space<vmem>>, %arg7: memref<1x32x64xf32, #tpu.memory_space<vmem>>, %arg8: memref<128x128xbf16, #tpu.memory_space<vmem>>, %arg9: memref<1x128xf32, #tpu.memory_space<vmem>>, %arg10: memref<1x32x128xf32, #tpu.memory_space<vmem>>) attributes {dimension_semantics = [#tpu.dimension_semantics<parallel>], iteration_bounds = array<i64: 2>, scalar_prefetch = 0 : i64, scratch_operands = 0 : i64, tpu.core_type = #tpu.core_type<tc>, window_params = [{transform_indices = @transform_0, window_bounds = array<i64: 1, 32, 2>}, {pipeline_mode = #tpu.pipeline_mode<synchronous>, transform_indices = @transform_1, window_bounds = array<i64: 2, 256>}, {pipeline_mode = #tpu.pipeline_mode<synchronous>, transform_indices = @transform_2, window_bounds = array<i64: 2, 64>}, {transform_indices = @transform_3, window_bounds = array<i64: 1, 32, 256>}, {transform_indices = @transform_4, window_bounds = array<i64: 1, 32, 256>}, {transform_indices = @transform_5, window_bounds = array<i64: 1, 32, 64>}, {transform_indices = @transform_6, window_bounds = array<i64: 1, 32, 64>}, {pipeline_mode = #tpu.pipeline_mode<synchronous>, transform_indices = @transform_7, window_bounds = array<i64: 128, 128>}, {pipeline_mode = #tpu.pipeline_mode<synchronous>, transform_indices = @transform_8, window_bounds = array<i64: 1, 128>}, {transform_indices = @transform_9, window_bounds = array<i64: 1, 32, 128>}]} {
    %c0 = arith.constant 0 : index
    %c0_0 = arith.constant 0 : index
    %c0_1 = arith.constant 0 : index
    %0 = vector.load %arg1[%c0, %c0_0, %c0_1] : memref<1x32x2xf32, #tpu.memory_space<vmem>>, vector<1x32x2xf32>
    %1 = vector.shape_cast %0 : vector<1x32x2xf32> to vector<32x2xf32>
    %2 = vector.extract_strided_slice %1 {offsets = [0, 0], sizes = [32, 1], strides = [1, 1]} : vector<32x2xf32> to vector<32x1xf32>
    %3 = vector.extract_strided_slice %1 {offsets = [0, 1], sizes = [32, 1], strides = [1, 1]} : vector<32x2xf32> to vector<32x1xf32>
    %c0_2 = arith.constant 0 : index
    %c0_3 = arith.constant 0 : index
    %4 = vector.load %arg8[%c0_2, %c0_3] : memref<128x128xbf16, #tpu.memory_space<vmem>>, vector<128x128xbf16>
    %c0_4 = arith.constant 0 : index
    %c0_5 = arith.constant 0 : index
    %5 = vector.load %arg2[%c0_4, %c0_5] : memref<2x256xf32, #tpu.memory_space<vmem>>, vector<2x256xf32>
    %6 = vector.extract_strided_slice %5 {offsets = [0, 0], sizes = [1, 256], strides = [1, 1]} : vector<2x256xf32> to vector<1x256xf32>
    %7 = vector.extract_strided_slice %5 {offsets = [1, 0], sizes = [1, 256], strides = [1, 1]} : vector<2x256xf32> to vector<1x256xf32>
    %cst = arith.constant 1.500000e+01 : f32
    %8 = vector.broadcast %cst : f32 to vector<32x1xf32>
    %9 = arith.mulf %2, %8 : vector<32x1xf32>
    %cst_6 = arith.constant 1.500000e+01 : f32
    %10 = vector.broadcast %cst_6 : f32 to vector<32x1xf32>
    %11 = arith.mulf %3, %10 : vector<32x1xf32>
    %12 = vector.broadcast %9 : vector<32x1xf32> to vector<32x256xf32>
    %13 = vector.broadcast %7 : vector<1x256xf32> to vector<32x256xf32>
    %14 = arith.subf %12, %13 : vector<32x256xf32>
    %15 = math.absf %14 : vector<32x256xf32>
    %cst_7 = arith.constant 1.000000e+00 : f32
    %16 = vector.broadcast %cst_7 : f32 to vector<32x256xf32>
    %17 = arith.subf %16, %15 : vector<32x256xf32>
    %cst_8 = arith.constant 0.000000e+00 : f32
    %18 = vector.broadcast %cst_8 : f32 to vector<32x256xf32>
    %19 = arith.maximumf %18, %17 : vector<32x256xf32>
    %20 = vector.broadcast %11 : vector<32x1xf32> to vector<32x256xf32>
    %21 = vector.broadcast %6 : vector<1x256xf32> to vector<32x256xf32>
    %22 = arith.subf %20, %21 : vector<32x256xf32>
    %23 = math.absf %22 : vector<32x256xf32>
    %cst_9 = arith.constant 1.000000e+00 : f32
    %24 = vector.broadcast %cst_9 : f32 to vector<32x256xf32>
    %25 = arith.subf %24, %23 : vector<32x256xf32>
    %cst_10 = arith.constant 0.000000e+00 : f32
    %26 = vector.broadcast %cst_10 : f32 to vector<32x256xf32>
    %27 = arith.maximumf %26, %25 : vector<32x256xf32>
    %28 = arith.mulf %19, %27 : vector<32x256xf32>
    %29 = arith.truncf %28 : vector<32x256xf32> to vector<32x256xbf16>
    %c0_11 = arith.constant 0 : index
    %c0_12 = arith.constant 0 : index
    %c0_13 = arith.constant 0 : index
    %30 = vector.load %arg4[%c0_11, %c0_12, %c0_13] : memref<1x32x256xf32, #tpu.memory_space<vmem>>, vector<1x32x256xf32>
    %31 = vector.shape_cast %30 : vector<1x32x256xf32> to vector<32x256xf32>
    %32 = arith.truncf %31 : vector<32x256xf32> to vector<32x256xbf16>
    %cst_14 = arith.constant dense<0.000000e+00> : vector<32x32xf32>
    %33 = tpu.matmul %29, %32, %cst_14 {dimension_numbers = #tpu.dot_dimension_numbers<[1], [1], [0], [0], [0, 0, 1, 0], [], []>} : vector<32x256xbf16>, vector<32x256xbf16>, vector<32x32xf32> -> vector<32x32xf32>
    %34 = arith.truncf %33 : vector<32x32xf32> to vector<32x32xbf16>
    %35 = vector.extract_strided_slice %4 {offsets = [0, 0], sizes = [32, 128], strides = [1, 1]} : vector<128x128xbf16> to vector<32x128xbf16>
    %cst_15 = arith.constant dense<0.000000e+00> : vector<32x128xf32>
    %36 = tpu.matmul %34, %35, %cst_15 {dimension_numbers = #tpu.dot_dimension_numbers<[1], [0], [0], [1], [0, 0, 1, 1], [], []>} : vector<32x32xbf16>, vector<32x128xbf16>, vector<32x128xf32> -> vector<32x128xf32>
    %c0_16 = arith.constant 0 : index
    %c0_17 = arith.constant 0 : index
    %c0_18 = arith.constant 0 : index
    %37 = vector.load %arg5[%c0_16, %c0_17, %c0_18] : memref<1x32x256xf32, #tpu.memory_space<vmem>>, vector<1x32x256xf32>
    %38 = vector.shape_cast %37 : vector<1x32x256xf32> to vector<32x256xf32>
    %39 = arith.truncf %38 : vector<32x256xf32> to vector<32x256xbf16>
    %cst_19 = arith.constant dense<0.000000e+00> : vector<32x32xf32>
    %40 = tpu.matmul %29, %39, %cst_19 {dimension_numbers = #tpu.dot_dimension_numbers<[1], [1], [0], [0], [0, 0, 1, 0], [], []>} : vector<32x256xbf16>, vector<32x256xbf16>, vector<32x32xf32> -> vector<32x32xf32>
    %41 = arith.truncf %40 : vector<32x32xf32> to vector<32x32xbf16>
    %42 = vector.extract_strided_slice %4 {offsets = [32, 0], sizes = [32, 128], strides = [1, 1]} : vector<128x128xbf16> to vector<32x128xbf16>
    %cst_20 = arith.constant dense<0.000000e+00> : vector<32x128xf32>
    %43 = tpu.matmul %41, %42, %cst_20 {dimension_numbers = #tpu.dot_dimension_numbers<[1], [0], [0], [1], [0, 0, 1, 1], [], []>} : vector<32x32xbf16>, vector<32x128xbf16>, vector<32x128xf32> -> vector<32x128xf32>
    %44 = arith.addf %36, %43 : vector<32x128xf32>
    %c0_21 = arith.constant 0 : index
    %c0_22 = arith.constant 0 : index
    %45 = vector.load %arg3[%c0_21, %c0_22] : memref<2x64xf32, #tpu.memory_space<vmem>>, vector<2x64xf32>
    %46 = vector.extract_strided_slice %45 {offsets = [0, 0], sizes = [1, 64], strides = [1, 1]} : vector<2x64xf32> to vector<1x64xf32>
    %47 = vector.extract_strided_slice %45 {offsets = [1, 0], sizes = [1, 64], strides = [1, 1]} : vector<2x64xf32> to vector<1x64xf32>
    %cst_23 = arith.constant 7.000000e+00 : f32
    %48 = vector.broadcast %cst_23 : f32 to vector<32x1xf32>
    %49 = arith.mulf %2, %48 : vector<32x1xf32>
    %cst_24 = arith.constant 7.000000e+00 : f32
    %50 = vector.broadcast %cst_24 : f32 to vector<32x1xf32>
    %51 = arith.mulf %3, %50 : vector<32x1xf32>
    %52 = vector.broadcast %49 : vector<32x1xf32> to vector<32x64xf32>
    %53 = vector.broadcast %47 : vector<1x64xf32> to vector<32x64xf32>
    %54 = arith.subf %52, %53 : vector<32x64xf32>
    %55 = math.absf %54 : vector<32x64xf32>
    %cst_25 = arith.constant 1.000000e+00 : f32
    %56 = vector.broadcast %cst_25 : f32 to vector<32x64xf32>
    %57 = arith.subf %56, %55 : vector<32x64xf32>
    %cst_26 = arith.constant 0.000000e+00 : f32
    %58 = vector.broadcast %cst_26 : f32 to vector<32x64xf32>
    %59 = arith.maximumf %58, %57 : vector<32x64xf32>
    %60 = vector.broadcast %51 : vector<32x1xf32> to vector<32x64xf32>
    %61 = vector.broadcast %46 : vector<1x64xf32> to vector<32x64xf32>
    %62 = arith.subf %60, %61 : vector<32x64xf32>
    %63 = math.absf %62 : vector<32x64xf32>
    %cst_27 = arith.constant 1.000000e+00 : f32
    %64 = vector.broadcast %cst_27 : f32 to vector<32x64xf32>
    %65 = arith.subf %64, %63 : vector<32x64xf32>
    %cst_28 = arith.constant 0.000000e+00 : f32
    %66 = vector.broadcast %cst_28 : f32 to vector<32x64xf32>
    %67 = arith.maximumf %66, %65 : vector<32x64xf32>
    %68 = arith.mulf %59, %67 : vector<32x64xf32>
    %69 = arith.truncf %68 : vector<32x64xf32> to vector<32x64xbf16>
    %c0_29 = arith.constant 0 : index
    %c0_30 = arith.constant 0 : index
    %c0_31 = arith.constant 0 : index
    %70 = vector.load %arg6[%c0_29, %c0_30, %c0_31] : memref<1x32x64xf32, #tpu.memory_space<vmem>>, vector<1x32x64xf32>
    %71 = vector.shape_cast %70 : vector<1x32x64xf32> to vector<32x64xf32>
    %72 = arith.truncf %71 : vector<32x64xf32> to vector<32x64xbf16>
    %cst_32 = arith.constant dense<0.000000e+00> : vector<32x32xf32>
    %73 = tpu.matmul %69, %72, %cst_32 {dimension_numbers = #tpu.dot_dimension_numbers<[1], [1], [0], [0], [0, 0, 1, 0], [], []>} : vector<32x64xbf16>, vector<32x64xbf16>, vector<32x32xf32> -> vector<32x32xf32>
    %74 = arith.truncf %73 : vector<32x32xf32> to vector<32x32xbf16>
    %75 = vector.extract_strided_slice %4 {offsets = [64, 0], sizes = [32, 128], strides = [1, 1]} : vector<128x128xbf16> to vector<32x128xbf16>
    %cst_33 = arith.constant dense<0.000000e+00> : vector<32x128xf32>
    %76 = tpu.matmul %74, %75, %cst_33 {dimension_numbers = #tpu.dot_dimension_numbers<[1], [0], [0], [1], [0, 0, 1, 1], [], []>} : vector<32x32xbf16>, vector<32x128xbf16>, vector<32x128xf32> -> vector<32x128xf32>
    %77 = arith.addf %44, %76 : vector<32x128xf32>
    %c0_34 = arith.constant 0 : index
    %c0_35 = arith.constant 0 : index
    %c0_36 = arith.constant 0 : index
    %78 = vector.load %arg7[%c0_34, %c0_35, %c0_36] : memref<1x32x64xf32, #tpu.memory_space<vmem>>, vector<1x32x64xf32>
    %79 = vector.shape_cast %78 : vector<1x32x64xf32> to vector<32x64xf32>
    %80 = arith.truncf %79 : vector<32x64xf32> to vector<32x64xbf16>
    %cst_37 = arith.constant dense<0.000000e+00> : vector<32x32xf32>
    %81 = tpu.matmul %69, %80, %cst_37 {dimension_numbers = #tpu.dot_dimension_numbers<[1], [1], [0], [0], [0, 0, 1, 0], [], []>} : vector<32x64xbf16>, vector<32x64xbf16>, vector<32x32xf32> -> vector<32x32xf32>
    %82 = arith.truncf %81 : vector<32x32xf32> to vector<32x32xbf16>
    %83 = vector.extract_strided_slice %4 {offsets = [96, 0], sizes = [32, 128], strides = [1, 1]} : vector<128x128xbf16> to vector<32x128xbf16>
    %cst_38 = arith.constant dense<0.000000e+00> : vector<32x128xf32>
    %84 = tpu.matmul %82, %83, %cst_38 {dimension_numbers = #tpu.dot_dimension_numbers<[1], [0], [0], [1], [0, 0, 1, 1], [], []>} : vector<32x32xbf16>, vector<32x128xbf16>, vector<32x128xf32> -> vector<32x128xf32>
    %85 = arith.addf %77, %84 : vector<32x128xf32>
    %c0_39 = arith.constant 0 : index
    %c0_40 = arith.constant 0 : index
    %86 = vector.load %arg9[%c0_39, %c0_40] : memref<1x128xf32, #tpu.memory_space<vmem>>, vector<1x128xf32>
    %87 = vector.broadcast %86 : vector<1x128xf32> to vector<32x128xf32>
    %88 = arith.addf %85, %87 : vector<32x128xf32>
    %c0_41 = arith.constant 0 : index
    %c0_42 = arith.constant 0 : index
    %c0_43 = arith.constant 0 : index
    %89 = vector.load %arg10[%c0_41, %c0_42, %c0_43] : memref<1x32x128xf32, #tpu.memory_space<vmem>>, vector<1x32x128xf32>
    %90 = vector.shape_cast %89 : vector<1x32x128xf32> to vector<32x128xf32>
    %91 = vector.shape_cast %88 : vector<32x128xf32> to vector<1x32x128xf32>
    tpu.vector_store %arg10[%c0_41, %c0_42, %c0_43], %91 {strides = array<i32>} : memref<1x32x128xf32, #tpu.memory_space<vmem>>, vector<1x32x128xf32>,
    return
  }
  func.func @transform_0(%arg0: i32) -> (i32, i32, i32) {
    %c0_i32 = arith.constant 0 : i32
    %c0_i32_0 = arith.constant 0 : i32
    %c0_i32_1 = arith.constant 0 : i32
    return %arg0, %c0_i32, %c0_i32_0 : i32, i32, i32
  }
  func.func @transform_1(%arg0: i32) -> (i32, i32) {
    %c0_i32 = arith.constant 0 : i32
    %c0_i32_0 = arith.constant 0 : i32
    %c0_i32_1 = arith.constant 0 : i32
    return %c0_i32, %c0_i32_0 : i32, i32
  }
  func.func @transform_2(%arg0: i32) -> (i32, i32) {
    %c0_i32 = arith.constant 0 : i32
    %c0_i32_0 = arith.constant 0 : i32
    %c0_i32_1 = arith.constant 0 : i32
    return %c0_i32, %c0_i32_0 : i32, i32
  }
  func.func @transform_3(%arg0: i32) -> (i32, i32, i32) {
    %c0_i32 = arith.constant 0 : i32
    %c0_i32_0 = arith.constant 0 : i32
    %c0_i32_1 = arith.constant 0 : i32
    return %arg0, %c0_i32, %c0_i32_0 : i32, i32, i32
  }
  func.func @transform_4(%arg0: i32) -> (i32, i32, i32) {
    %c0_i32 = arith.constant 0 : i32
    %c0_i32_0 = arith.constant 0 : i32
    %c0_i32_1 = arith.constant 0 : i32
    return %arg0, %c0_i32, %c0_i32_0 : i32, i32, i32
  }
  func.func @transform_5(%arg0: i32) -> (i32, i32, i32) {
    %c0_i32 = arith.constant 0 : i32
    %c0_i32_0 = arith.constant 0 : i32
    %c0_i32_1 = arith.constant 0 : i32
    return %arg0, %c0_i32, %c0_i32_0 : i32, i32, i32
  }
  func.func @transform_6(%arg0: i32) -> (i32, i32, i32) {
    %c0_i32 = arith.constant 0 : i32
    %c0_i32_0 = arith.constant 0 : i32
    %c0_i32_1 = arith.constant 0 : i32
    return %arg0, %c0_i32, %c0_i32_0 : i32, i32, i32
  }
  func.func @transform_7(%arg0: i32) -> (i32, i32) {
    %c0_i32 = arith.constant 0 : i32
    %c0_i32_0 = arith.constant 0 : i32
    %c0_i32_1 = arith.constant 0 : i32
    return %c0_i32, %c0_i32_0 : i32, i32
  }
  func.func @transform_8(%arg0: i32) -> (i32, i32) {
    %c0_i32 = arith.constant 0 : i32
    %c0_i32_0 = arith.constant 0 : i32
    %c0_i32_1 = arith.constant 0 : i32
    return %c0_i32, %c0_i32_0 : i32, i32
  }
  func.func @transform_9(%arg0: i32) -> (i32, i32, i32) {
    %c0_i32 = arith.constant 0 : i32
    %c0_i32_0 = arith.constant 0 : i32
    %c0_i32_1 = arith.constant 0 : i32
    return %arg0, %c0_i32, %c0_i32_0 : i32, i32, i32
  }
}

</mosaic_0001>

<llo_original>
// kernel: tpu_custom_call.1
$region0: #{tpu_custom_call.1}
  #allocation0 [shape = 'u32[]', space=smem, size = 0x4, offset = 0x4, fixed_abs, tag = 'smem constant byte address 0x4 - core index']
  #allocation1 [shape = 'u32[72,128]{1,0:T(1,128)}', space=vmem, size = 0x9000, scoped, tag = 'internal scratch']
  %s0 = inlined_call_operand.vmem [shape: f32[2,32,2], index: 0, kind: input, shape index: {}]
  %s1 = inlined_call_operand.vmem [shape: f32[2,256], index: 1, kind: input, shape index: {}]
  %s2 = inlined_call_operand.vmem [shape: f32[2,64], index: 2, kind: input, shape index: {}]
  %s3 = inlined_call_operand.hbm [shape: f32[2,32,256], index: 3, kind: input, shape index: {}]
  %s4 = inlined_call_operand.hbm [shape: f32[2,32,256], index: 4, kind: input, shape index: {}]
  %s5 = inlined_call_operand.vmem [shape: f32[2,32,64], index: 5, kind: input, shape index: {}]
  %s6 = inlined_call_operand.hbm [shape: f32[2,32,64], index: 6, kind: input, shape index: {}]
  %s7 = inlined_call_operand.hbm [shape: bf16[128,128], index: 7, kind: input, shape index: {}]
  %s8 = inlined_call_operand.vmem [shape: f32[1,128], index: 8, kind: input, shape index: {}]
  %s9 = inlined_call_operand.hbm [shape: f32[2,32,128], index: 9, kind: output, shape index: {}]
  %s10 = sld [smem:[#allocation0]]
  $region85: #{tpu_custom_call.1} parent=0
    _
  %s12 = ssub.s32 1, %s10
  %s13 = scalar_select 0, %s12, %s10
  $region1: #{tpu_custom_call.1} parent=0
    #allocation2 [shape = 'u8[65536]{0}', space=vmem, size = 0x10000, scoped, tag = 'input window, operand 3']
    #allocation3 [shape = 's32[2]{0}', space=sflag, size = 0x8, scoped, tag = 'scoped memory for tpu_custom_call.1']
    #allocation4 [shape = 's32[2]{0}', space=sflag, size = 0x8, scoped, tag = 'scoped memory for tpu_custom_call.1']
    #allocation5 [shape = 'u8[65536]{0}', space=vmem, size = 0x10000, scoped, tag = 'input window, operand 4']
    #allocation6 [shape = 's32[2]{0}', space=sflag, size = 0x8, scoped, tag = 'scoped memory for tpu_custom_call.1']
    #allocation7 [shape = 'u8[32768]{0}', space=vmem, size = 0x8000, scoped, tag = 'input window, operand 6']
    #allocation8 [shape = 'u8[32768]{0}', space=vmem, size = 0x8000, scoped, tag = 'input window, operand 7, single buffered']
    #allocation9 [shape = 's32[1]{0}', space=sflag, size = 0x4, scoped, tag = 'scoped memory for tpu_custom_call.1']
    #allocation10 [shape = 'u8[32768]{0}', space=vmem, size = 0x8000, scoped, tag = 'output window, operand 0']
    %14 = vsyncpa [#allocation3], 0
    %s15 = scalar_lea.sflag [#allocation3], 1
    %16 = vsyncpa %s15, 0
    %17 = vsyncpa [#allocation6], 0
    %s18 = scalar_lea.sflag [#allocation6], 1
    %19 = vsyncpa %s18, 0
    %20 = vsyncpa [#allocation9], 0
    %21 = vsyncpa [#allocation4], 0
    %s22 = scalar_lea.sflag [#allocation4], 1
    %23 = vsyncpa %s22, 0
    loop: start=0, step=1, limit=4
    $region2: #{tpu_custom_call.1} parent=1 // loop_pre_header
      _
    $region3: #{tpu_custom_call.1} parent=1 // loop_header
      %s25 = sphi 0, %s29
      %p26 = scmp.ge.s32.totalorder %s25, 4
      %s35 = sphi 0, %s37
      %s38 = sphi 0, %s35
      %s39 = sphi 0, %s38
      %s55 = sphi 0, %s39
      %s59 = sphi 0, %s59
      %s61 = sphi 0, %s59
      %s62 = sphi 0, %s61
      %s76 = sphi 0, %s62
      %s80 = sphi 0, %s80
      %s82 = sphi 0, %s80
      %s83 = sphi 0, %s82
      %s97 = sphi 0, %s83
      %s103 = sphi 0, %s105
      %s106 = sphi 0, %s103
      %s107 = sphi 0, %s106
      %s123 = sphi 0, %s107
      %s129 = sphi 0, %s131
      %s132 = sphi 0, %s129
      %s133 = sphi 0, %s132
      %s149 = sphi 0, %s133
      %s155 = sphi 0, %s157
      %s158 = sphi 0, %s155
      %s159 = sphi 0, %s158
      %s175 = sphi 0, %s159
      %s181 = sphi 0, %s183
      %s184 = sphi 0, %s181
      %s185 = sphi 0, %s184
      %s201 = sphi 0, %s185
      %s205 = sphi 0, %s205
      %s207 = sphi 0, %s205
      %s208 = sphi 0, %s207
      %s222 = sphi 0, %s208
      %s226 = sphi 0, %s226
      %s228 = sphi 0, %s226
      %s229 = sphi 0, %s228
      %s243 = sphi 0, %s229
      %s249 = sphi 0, %s251
      %s252 = sphi 0, %s249
      %s253 = sphi 0, %s252
      %s269 = sphi 0, %s253
    $region4: #{tpu_custom_call.1} parent=1 // loop_header_branch
      %28 = sbr.rel (%p26) target = $region8
    $region5: #{tpu_custom_call.1} parent=1 // loop_body
      %s30 = ssub.s32 %s25, 1
      %s31 = ssub.s32 %s25, 2
      %s32 = sadd.s32 %s25, 1
      %s33 = ssub.s32 %s25, %s32
      %p34 = scmp.eq.s32.totalorder %s33, 0
      %s36 = sadd.s32 %s35, 1
      %s37 = scalar_select %p34, %s35, %s36
      %p40 = pneg %p34
      %p41 = scmp.eq.s32.totalorder %s25, 1
      %p42 = por %p40, %p41
      %p43 = scmp.ne.s32.totalorder %s35, %s38
      %p44 = scmp.eq.s32.totalorder %s25, 0
      %p45 = por %p43, %p44
      %p46 = scmp.ne.s32.totalorder %s35, %s38
      %p47 = scmp.eq.s32.totalorder %s30, 1
      %p48 = por %p46, %p47
      %p49 = scmp.ne.s32.totalorder %s38, %s39
      %p50 = scmp.eq.s32.totalorder %s30, 0
      %p51 = por %p49, %p50
      %p52 = scmp.ne.s32.totalorder %s38, %s39
      %p53 = scmp.eq.s32.totalorder %s31, 1
      %p54 = por %p52, %p53
      %p56 = scmp.ne.s32.totalorder %s39, %s55
      %p57 = scmp.eq.s32.totalorder %s31, 0
      %p58 = por %p56, %p57
      %s60 = sadd.s32 %s59, 1
      %p63 = scmp.eq.s32.totalorder %s25, 1
      %p64 = scmp.ne.s32.totalorder %s59, %s61
      %p65 = scmp.eq.s32.totalorder %s25, 0
      %p66 = por %p64, %p65
      %p67 = scmp.ne.s32.totalorder %s59, %s61
      %p68 = scmp.eq.s32.totalorder %s30, 1
      %p69 = por %p67, %p68
      %p70 = scmp.ne.s32.totalorder %s61, %s62
      %p71 = scmp.eq.s32.totalorder %s30, 0
      %p72 = por %p70, %p71
      %p73 = scmp.ne.s32.totalorder %s61, %s62
      %p74 = scmp.eq.s32.totalorder %s31, 1
      %p75 = por %p73, %p74
      %p77 = scmp.ne.s32.totalorder %s62, %s76
      %p78 = scmp.eq.s32.totalorder %s31, 0
      %p79 = por %p77, %p78
      %s81 = sadd.s32 %s80, 1
      %p84 = scmp.eq.s32.totalorder %s25, 1
      %p85 = scmp.ne.s32.totalorder %s80, %s82
      %p86 = scmp.eq.s32.totalorder %s25, 0
      %p87 = por %p85, %p86
      %p88 = scmp.ne.s32.totalorder %s80, %s82
      %p89 = scmp.eq.s32.totalorder %s30, 1
      %p90 = por %p88, %p89
      %p91 = scmp.ne.s32.totalorder %s82, %s83
      %p92 = scmp.eq.s32.totalorder %s30, 0
      %p93 = por %p91, %p92
      %p94 = scmp.ne.s32.totalorder %s82, %s83
      %p95 = scmp.eq.s32.totalorder %s31, 1
      %p96 = por %p94, %p95
      %p98 = scmp.ne.s32.totalorder %s83, %s97
      %p99 = scmp.eq.s32.totalorder %s31, 0
      %p100 = por %p98, %p99
      %s101 = ssub.s32 %s25, %s32
      %p102 = scmp.eq.s32.totalorder %s101, 0
      %s104 = sadd.s32 %s103, 1
      %s105 = scalar_select %p102, %s103, %s104
      %p108 = pneg %p102
      %p109 = scmp.eq.s32.totalorder %s25, 1
      %p110 = por %p108, %p109
      %p111 = scmp.ne.s32.totalorder %s103, %s106
      %p112 = scmp.eq.s32.totalorder %s25, 0
      %p113 = por %p111, %p112
      %p114 = scmp.ne.s32.totalorder %s103, %s106
      %p115 = scmp.eq.s32.totalorder %s30, 1
      %p116 = por %p114, %p115
      %p117 = scmp.ne.s32.totalorder %s106, %s107
      %p118 = scmp.eq.s32.totalorder %s30, 0
      %p119 = por %p117, %p118
      %p120 = scmp.ne.s32.totalorder %s106, %s107
      %p121 = scmp.eq.s32.totalorder %s31, 1
      %p122 = por %p120, %p121
      %p124 = scmp.ne.s32.totalorder %s107, %s123
      %p125 = scmp.eq.s32.totalorder %s31, 0
      %p126 = por %p124, %p125
      %s127 = ssub.s32 %s25, %s32
      %p128 = scmp.eq.s32.totalorder %s127, 0
      %s130 = sadd.s32 %s129, 1
      %s131 = scalar_select %p128, %s129, %s130
      %p134 = pneg %p128
      %p135 = scmp.eq.s32.totalorder %s25, 1
      %p136 = por %p134, %p135
      %p137 = scmp.ne.s32.totalorder %s129, %s132
      %p138 = scmp.eq.s32.totalorder %s25, 0
      %p139 = por %p137, %p138
      %p140 = scmp.ne.s32.totalorder %s129, %s132
      %p141 = scmp.eq.s32.totalorder %s30, 1
      %p142 = por %p140, %p141
      %p143 = scmp.ne.s32.totalorder %s132, %s133
      %p144 = scmp.eq.s32.totalorder %s30, 0
      %p145 = por %p143, %p144
      %p146 = scmp.ne.s32.totalorder %s132, %s133
      %p147 = scmp.eq.s32.totalorder %s31, 1
      %p148 = por %p146, %p147
      %p150 = scmp.ne.s32.totalorder %s133, %s149
      %p151 = scmp.eq.s32.totalorder %s31, 0
      %p152 = por %p150, %p151
      %s153 = ssub.s32 %s25, %s32
      %p154 = scmp.eq.s32.totalorder %s153, 0
      %s156 = sadd.s32 %s155, 1
      %s157 = scalar_select %p154, %s155, %s156
      %p160 = pneg %p154
      %p161 = scmp.eq.s32.totalorder %s25, 1
      %p162 = por %p160, %p161
      %p163 = scmp.ne.s32.totalorder %s155, %s158
      %p164 = scmp.eq.s32.totalorder %s25, 0
      %p165 = por %p163, %p164
      %p166 = scmp.ne.s32.totalorder %s155, %s158
      %p167 = scmp.eq.s32.totalorder %s30, 1
      %p168 = por %p166, %p167
      %p169 = scmp.ne.s32.totalorder %s158, %s159
      %p170 = scmp.eq.s32.totalorder %s30, 0
      %p171 = por %p169, %p170
      %p172 = scmp.ne.s32.totalorder %s158, %s159
      %p173 = scmp.eq.s32.totalorder %s31, 1
      %p174 = por %p172, %p173
      %p176 = scmp.ne.s32.totalorder %s159, %s175
      %p177 = scmp.eq.s32.totalorder %s31, 0
      %p178 = por %p176, %p177
      %s179 = ssub.s32 %s25, %s32
      %p180 = scmp.eq.s32.totalorder %s179, 0
      %s182 = sadd.s32 %s181, 1
      %s183 = scalar_select %p180, %s181, %s182
      %p186 = pneg %p180
      %p187 = scmp.eq.s32.totalorder %s25, 1
      %p188 = por %p186, %p187
      %p189 = scmp.ne.s32.totalorder %s181, %s184
      %p190 = scmp.eq.s32.totalorder %s25, 0
      %p191 = por %p189, %p190
      %p192 = scmp.ne.s32.totalorder %s181, %s184
      %p193 = scmp.eq.s32.totalorder %s30, 1
      %p194 = por %p192, %p193
      %p195 = scmp.ne.s32.totalorder %s184, %s185
      %p196 = scmp.eq.s32.totalorder %s30, 0
      %p197 = por %p195, %p196
      %p198 = scmp.ne.s32.totalorder %s184, %s185
      %p199 = scmp.eq.s32.totalorder %s31, 1
      %p200 = por %p198, %p199
      %p202 = scmp.ne.s32.totalorder %s185, %s201
      %p203 = scmp.eq.s32.totalorder %s31, 0
      %p204 = por %p202, %p203
      %s206 = sadd.s32 %s205, 1
      %p209 = scmp.eq.s32.totalorder %s25, 1
      %p210 = scmp.ne.s32.totalorder %s205, %s207
      %p211 = scmp.eq.s32.totalorder %s25, 0
      %p212 = por %p210, %p211
      %p213 = scmp.ne.s32.totalorder %s205, %s207
      %p214 = scmp.eq.s32.totalorder %s30, 1
      %p215 = por %p213, %p214
      %p216 = scmp.ne.s32.totalorder %s207, %s208
      %p217 = scmp.eq.s32.totalorder %s30, 0
      %p218 = por %p216, %p217
      %p219 = scmp.ne.s32.totalorder %s207, %s208
      %p220 = scmp.eq.s32.totalorder %s31, 1
      %p221 = por %p219, %p220
      %p223 = scmp.ne.s32.totalorder %s208, %s222
      %p224 = scmp.eq.s32.totalorder %s31, 0
      %p225 = por %p223, %p224
      %s227 = sadd.s32 %s226, 1
      %p230 = scmp.eq.s32.totalorder %s25, 1
      %p231 = scmp.ne.s32.totalorder %s226, %s228
      %p232 = scmp.eq.s32.totalorder %s25, 0
      %p233 = por %p231, %p232
      %p234 = scmp.ne.s32.totalorder %s226, %s228
      %p235 = scmp.eq.s32.totalorder %s30, 1
      %p236 = por %p234, %p235
      %p237 = scmp.ne.s32.totalorder %s228, %s229
      %p238 = scmp.eq.s32.totalorder %s30, 0
      %p239 = por %p237, %p238
      %p240 = scmp.ne.s32.totalorder %s228, %s229
      %p241 = scmp.eq.s32.totalorder %s31, 1
      %p242 = por %p240, %p241
      %p244 = scmp.ne.s32.totalorder %s229, %s243
      %p245 = scmp.eq.s32.totalorder %s31, 0
      %p246 = por %p244, %p245
      %s247 = ssub.s32 %s25, %s32
      %p248 = scmp.eq.s32.totalorder %s247, 0
      %s250 = sadd.s32 %s249, 1
      %s251 = scalar_select %p248, %s249, %s250
      %p254 = pneg %p248
      %p255 = scmp.eq.s32.totalorder %s25, 1
      %p256 = por %p254, %p255
      %p257 = scmp.ne.s32.totalorder %s249, %s252
      %p258 = scmp.eq.s32.totalorder %s25, 0
      %p259 = por %p257, %p258
      %p260 = scmp.ne.s32.totalorder %s249, %s252
      %p261 = scmp.eq.s32.totalorder %s30, 1
      %p262 = por %p260, %p261
      %p263 = scmp.ne.s32.totalorder %s252, %s253
      %p264 = scmp.eq.s32.totalorder %s30, 0
      %p265 = por %p263, %p264
      %p266 = scmp.ne.s32.totalorder %s252, %s253
      %p267 = scmp.eq.s32.totalorder %s31, 1
      %p268 = por %p266, %p267
      %p270 = scmp.ne.s32.totalorder %s253, %s269
      %p271 = scmp.eq.s32.totalorder %s31, 0
      %p272 = por %p270, %p271
      %p273 = scmp.le.s32.totalorder 1, %s25
      %p274 = scmp.lt.s32.totalorder %s25, 3
      %p275 = pnand %p273, %p274
      %p276 = pneg %p275
      // Predicated region
      $region9: #{tpu_custom_call.1} parent=5 // pred_check
        _
      $region10: #{tpu_custom_call.1} parent=5 // pred_check_branch
        %278 = sbr.rel (%p275) target = $region12
      $region11: #{tpu_custom_call.1} parent=5 // pred_region
        %s279 = ssub.s32 %s25, 1
        // Predicated region
        $region13: #{tpu_custom_call.1} parent=11 // pred_check
          %p280 = pneg %p72
        $region14: #{tpu_custom_call.1} parent=11 // pred_check_branch
          %282 = sbr.rel (%p280) target = $region16
        $region15: #{tpu_custom_call.1} parent=11 // pred_region
          _
        $region16: #{tpu_custom_call.1} parent=11 // pred_fallthru
          _
        // Predicated region
        $region17: #{tpu_custom_call.1} parent=11 // pred_check
          %p283 = pneg %p93
        $region18: #{tpu_custom_call.1} parent=11 // pred_check_branch
          %285 = sbr.rel (%p283) target = $region20
        $region19: #{tpu_custom_call.1} parent=11 // pred_region
          _
        $region20: #{tpu_custom_call.1} parent=11 // pred_fallthru
          _
        // Predicated region
        $region21: #{tpu_custom_call.1} parent=11 // pred_check
          %p286 = pneg %p218
        $region22: #{tpu_custom_call.1} parent=11 // pred_check_branch
          %288 = sbr.rel (%p286) target = $region24
        $region23: #{tpu_custom_call.1} parent=11 // pred_region
          %290 = vsyncadd [#allocation9], 0
          %s291 = sshll.u32 %s7, 4
          %s292 = int_to_ptr.hbm [resolvable:$true] %s291
          %s293 = sshll.u32 [#allocation8], 4
          %s294 = int_to_ptr.vmem [resolvable:$true] %s293
          %299 = dma.hbm_to_vmem [thread:$0]  %s292, 1024, %s294, [#allocation9], 64, 64, 4
        $region24: #{tpu_custom_call.1} parent=11 // pred_fallthru
          _
        // Predicated region
        $region25: #{tpu_custom_call.1} parent=11 // pred_check
          %p300 = pneg %p239
        $region26: #{tpu_custom_call.1} parent=11 // pred_check_branch
          %302 = sbr.rel (%p300) target = $region28
        $region27: #{tpu_custom_call.1} parent=11 // pred_region
          _
        $region28: #{tpu_custom_call.1} parent=11 // pred_fallthru
          _
      $region12: #{tpu_custom_call.1} parent=5 // pred_fallthru
        _
      %p303 = scmp.lt.s32.totalorder %s25, 2
      // Predicated region
      $region29: #{tpu_custom_call.1} parent=5 // pred_check
        %p304 = pneg %p303
      $region30: #{tpu_custom_call.1} parent=5 // pred_check_branch
        %306 = sbr.rel (%p304) target = $region32
      $region31: #{tpu_custom_call.1} parent=5 // pred_region
        // Predicated region
        $region33: #{tpu_custom_call.1} parent=31 // pred_check
          %p307 = pneg %p45
        $region34: #{tpu_custom_call.1} parent=31 // pred_check_branch
          %309 = sbr.rel (%p307) target = $region36
        $region35: #{tpu_custom_call.1} parent=31 // pred_region
          %p310 = scmp.lt.s32.totalorder %s25, 1
          %s311 = scalar_select %p310, %s25, 1
          %s312 = smul.addr %s311, 4
          %s313 = smul.addr %s312, 8
          %s314 = scalar_lea.vmem %s0, %s313
        $region36: #{tpu_custom_call.1} parent=31 // pred_fallthru
          _
        // Predicated region
        $region37: #{tpu_custom_call.1} parent=31 // pred_check
          %p315 = pneg %p113
        $region38: #{tpu_custom_call.1} parent=31 // pred_check_branch
          %317 = sbr.rel (%p315) target = $region40
        $region39: #{tpu_custom_call.1} parent=31 // pred_region
          %s318 = sand.u32 %s103, 1
          %s319 = scalar_lea.sflag [#allocation3], %s318
          %s320 = sand.u32 %s103, 1
          %s321 = smul.addr %s320, 64
          %s322 = scalar_lea.vmem [#allocation2], %s321
          %324 = vsyncadd %s319, 0
          %s325 = smul.addr %s25, 8
          %s326 = smul.addr %s325, 8
          %s327 = scalar_lea.hbm %s3, %s326
          %s328 = sshll.u32 %s327, 4
          %s329 = int_to_ptr.hbm [resolvable:$true] %s328
          %s330 = sshll.u32 %s322, 4
          %s331 = int_to_ptr.vmem [resolvable:$true] %s330
          %336 = dma.hbm_to_vmem [thread:$0]  %s329, 1024, %s331, %s319, 256, 256, 16
        $region40: #{tpu_custom_call.1} parent=31 // pred_fallthru
          _
        // Predicated region
        $region41: #{tpu_custom_call.1} parent=31 // pred_check
          %p337 = pneg %p139
        $region42: #{tpu_custom_call.1} parent=31 // pred_check_branch
          %339 = sbr.rel (%p337) target = $region44
        $region43: #{tpu_custom_call.1} parent=31 // pred_region
          %s340 = sand.u32 %s25, 1
          %s341 = scalar_lea.sflag [#allocation6], %s340
          %s342 = sand.u32 %s129, 1
          %s343 = smul.addr %s342, 64
          %s344 = scalar_lea.vmem [#allocation5], %s343
          %346 = vsyncadd %s341, 0
          %s347 = smul.addr %s25, 8
          %s348 = smul.addr %s347, 8
          %s349 = scalar_lea.hbm %s4, %s348
          %s350 = sshll.u32 %s349, 4
          %s351 = int_to_ptr.hbm [resolvable:$true] %s350
          %s352 = sshll.u32 %s344, 4
          %s353 = int_to_ptr.vmem [resolvable:$true] %s352
          %358 = dma.hbm_to_vmem [thread:$0]  %s351, 1024, %s353, %s341, 256, 256, 16
        $region44: #{tpu_custom_call.1} parent=31 // pred_fallthru
          _
        // Predicated region
        $region45: #{tpu_custom_call.1} parent=31 // pred_check
          %p359 = pneg %p165
        $region46: #{tpu_custom_call.1} parent=31 // pred_check_branch
          %361 = sbr.rel (%p359) target = $region48
        $region47: #{tpu_custom_call.1} parent=31 // pred_region
          %p362 = scmp.lt.s32.totalorder %s25, 1
          %s363 = scalar_select %p362, %s25, 1
          %s364 = smul.addr %s363, 4
          %s365 = smul.addr %s364, 8
          %s366 = scalar_lea.vmem %s5, %s365
        $region48: #{tpu_custom_call.1} parent=31 // pred_fallthru
          _
        // Predicated region
        $region49: #{tpu_custom_call.1} parent=31 // pred_check
          %p367 = pneg %p191
        $region50: #{tpu_custom_call.1} parent=31 // pred_check_branch
          %369 = sbr.rel (%p367) target = $region52
        $region51: #{tpu_custom_call.1} parent=31 // pred_region
          %s370 = sand.u32 %s25, 1
          %s371 = scalar_lea.sflag [#allocation6], %s370
          %s372 = sand.u32 %s181, 1
          %s373 = smul.addr %s372, 32
          %s374 = scalar_lea.vmem [#allocation7], %s373
          %376 = vsyncadd %s371, 0
          %s377 = smul.addr %s25, 4
          %s378 = smul.addr %s377, 8
          %s379 = scalar_lea.hbm %s6, %s378
          %s380 = sshll.u32 %s379, 4
          %s381 = int_to_ptr.hbm [resolvable:$true] %s380
          %s382 = sshll.u32 %s374, 4
          %s383 = int_to_ptr.vmem [resolvable:$true] %s382
          %388 = dma.hbm_to_vmem [thread:$0]  %s381, 512, %s383, %s371, 128, 128, 8
        $region52: #{tpu_custom_call.1} parent=31 // pred_fallthru
          _
      $region32: #{tpu_custom_call.1} parent=5 // pred_fallthru
        _
      %p389 = scmp.le.s32.totalorder 1, %s25
      %p390 = scmp.lt.s32.totalorder %s25, 3
      %p391 = pnand %p389, %p390
      %p392 = pneg %p391
      // Predicated region
      $region53: #{tpu_custom_call.1} parent=5 // pred_check
        _
      $region54: #{tpu_custom_call.1} parent=5 // pred_check_branch
        %394 = sbr.rel (%p391) target = $region56
      $region55: #{tpu_custom_call.1} parent=5 // pred_region
        %s395 = ssub.s32 %s25, 1
        %s396 = sand.u32 %s106, 1
        %s397 = scalar_lea.sflag [#allocation3], %s396
        %s398 = sand.u32 %s106, 1
        %s399 = smul.addr %s398, 64
        %s400 = scalar_lea.vmem [#allocation2], %s399
        // Predicated region
        $region57: #{tpu_custom_call.1} parent=55 // pred_check
          %p401 = pneg %p119
        $region58: #{tpu_custom_call.1} parent=55 // pred_check_branch
          %403 = sbr.rel (%p401) target = $region60
        $region59: #{tpu_custom_call.1} parent=55 // pred_region
          %405 = dma.done %s397, 1024
        $region60: #{tpu_custom_call.1} parent=55 // pred_fallthru
          _
        %s406 = sand.u32 %s30, 1
        %s407 = scalar_lea.sflag [#allocation6], %s406
        %s408 = sand.u32 %s132, 1
        %s409 = smul.addr %s408, 64
        %s410 = scalar_lea.vmem [#allocation5], %s409
        // Predicated region
        $region61: #{tpu_custom_call.1} parent=55 // pred_check
          %p411 = pneg %p145
        $region62: #{tpu_custom_call.1} parent=55 // pred_check_branch
          %413 = sbr.rel (%p411) target = $region64
        $region63: #{tpu_custom_call.1} parent=55 // pred_region
          %415 = dma.done %s407, 1024
        $region64: #{tpu_custom_call.1} parent=55 // pred_fallthru
          _
        %s416 = sand.u32 %s30, 1
        %s417 = scalar_lea.sflag [#allocation6], %s416
        %s418 = sand.u32 %s184, 1
        %s419 = smul.addr %s418, 32
        %s420 = scalar_lea.vmem [#allocation7], %s419
        // Predicated region
        $region65: #{tpu_custom_call.1} parent=55 // pred_check
          %p421 = pneg %p197
        $region66: #{tpu_custom_call.1} parent=55 // pred_check_branch
          %423 = sbr.rel (%p421) target = $region68
        $region67: #{tpu_custom_call.1} parent=55 // pred_region
          %425 = dma.done %s417, 512
        $region68: #{tpu_custom_call.1} parent=55 // pred_fallthru
          _
        // Predicated region
        $region69: #{tpu_custom_call.1} parent=55 // pred_check
          %p426 = pneg %p218
        $region70: #{tpu_custom_call.1} parent=55 // pred_check_branch
          %428 = sbr.rel (%p426) target = $region72
        $region71: #{tpu_custom_call.1} parent=55 // pred_region
          %430 = dma.done [#allocation9], 1024
        $region72: #{tpu_custom_call.1} parent=55 // pred_fallthru
          _
        %p431 = scmp.lt.s32.totalorder %s30, 1
        %s432 = scalar_select %p431, %s30, 1
        %s433 = smul.addr %s432, 4
        %s434 = smul.addr %s433, 8
        %s435 = scalar_lea.vmem %s0, %s434
        %p436 = pneg %p51
        %p437 = pneg %p48
        %p438 = pneg %p72
        %p439 = pneg %p69
        %p440 = pneg %p93
        %p441 = pneg %p90
        %s442 = sand.u32 %s106, 1
        %s443 = scalar_lea.sflag [#allocation3], %s442
        %s444 = sand.u32 %s106, 1
        %s445 = smul.addr %s444, 64
        %s446 = scalar_lea.vmem [#allocation2], %s445
        %p447 = pneg %p119
        %p448 = pneg %p116
        %s449 = sand.u32 %s30, 1
        %s450 = scalar_lea.sflag [#allocation6], %s449
        %s451 = sand.u32 %s132, 1
        %s452 = smul.addr %s451, 64
        %s453 = scalar_lea.vmem [#allocation5], %s452
        %p454 = pneg %p145
        %p455 = pneg %p142
        %p456 = scmp.lt.s32.totalorder %s30, 1
        %s457 = scalar_select %p456, %s30, 1
        %s458 = smul.addr %s457, 4
        %s459 = smul.addr %s458, 8
        %s460 = scalar_lea.vmem %s5, %s459
        %p461 = pneg %p171
        %p462 = pneg %p168
        %s463 = sand.u32 %s30, 1
        %s464 = scalar_lea.sflag [#allocation6], %s463
        %s465 = sand.u32 %s184, 1
        %s466 = smul.addr %s465, 32
        %s467 = scalar_lea.vmem [#allocation7], %s466
        %p468 = pneg %p197
        %p469 = pneg %p194
        %p470 = pneg %p218
        %p471 = pneg %p215
        %p472 = pneg %p239
        %p473 = pneg %p236
        %p474 = pneg %p265
        %p475 = pneg %p262
        %s476 = sand.u32 %s252, 1
        %s477 = scalar_lea.sflag [#allocation4], %s476
        %s478 = sand.u32 %s252, 1
        %s479 = smul.addr %s478, 32
        %s480 = scalar_lea.vmem [#allocation10], %s479
        %p481 = scmp.lt.s32.totalorder %s30, 1
        %s482 = scalar_select %p481, %s30, 1
        %s483 = smul.addr %s482, 4
        %s484 = smul.addr %s483, 8
        %s485 = scalar_lea.vmem %s0, %s484
        %p486 = scmp.lt.s32.totalorder %s30, 1
        %s487 = scalar_select %p486, %s30, 1
        %s488 = smul.addr %s487, 4
        %s489 = smul.addr %s488, 8
        %s490 = scalar_lea.vmem %s5, %s489
        %v492 = vld [vmem:[%s485] sm:$0xff]
        %v493 = vld [vmem:[%s485 + $0x8] sm:$0xff]
        %v494 = vld [vmem:[%s485 + $0x10] sm:$0xff]
        %v495 = vld [vmem:[%s485 + $0x18] sm:$0xff]
        %v496 = vld [vmem:[#allocation8] sm:$0xf]
        %v497 = vld [vmem:[#allocation8 + $0x4] sm:$0xf]
        %v498 = vld [vmem:[#allocation8 + $0x8] sm:$0xf]
        %v499 = vld [vmem:[#allocation8 + $0xc] sm:$0xf]
        %v500 = vld [vmem:[#allocation8 + $0x10] sm:$0xf]
        %v501 = vld [vmem:[#allocation8 + $0x14] sm:$0xf]
        %v502 = vld [vmem:[#allocation8 + $0x18] sm:$0xf]
        %v503 = vld [vmem:[#allocation8 + $0x1c] sm:$0xf]
        %v504 = vld [vmem:[#allocation8 + $0x20] sm:$0xf]
        %v505 = vld [vmem:[#allocation8 + $0x24] sm:$0xf]
        %v506 = vld [vmem:[#allocation8 + $0x28] sm:$0xf]
        %v507 = vld [vmem:[#allocation8 + $0x2c] sm:$0xf]
        %v508 = vld [vmem:[#allocation8 + $0x30] sm:$0xf]
        %v509 = vld [vmem:[#allocation8 + $0x34] sm:$0xf]
        %v510 = vld [vmem:[#allocation8 + $0x38] sm:$0xf]
        %v511 = vld [vmem:[#allocation8 + $0x3c] sm:$0xf]
        %v512 = vld [vmem:[%s1] sm:$0xf]
        %v513 = vmul.f32 %v492, 15.0
        %v514 = vmul.f32 %v493, 15.0
        %v515 = vmul.f32 %v494, 15.0
        %v516 = vmul.f32 %v495, 15.0
        %518 = vset.pattern.permute.xlu0 0
        %519 = vperm.xlu0 %518, %v513
        %v520 = vpop.permute.xlu0 %519
        %523 = vset.pattern.permute.xlu0 0
        %524 = vperm.xlu0 %523, %v514
        %v525 = vpop.permute.xlu0 %524
        %528 = vset.pattern.permute.xlu0 0
        %529 = vperm.xlu0 %528, %v515
        %v530 = vpop.permute.xlu0 %529
        %533 = vset.pattern.permute.xlu0 0
        %534 = vperm.xlu0 %533, %v516
        %v535 = vpop.permute.xlu0 %534
        %v538 = vperm.slane %v512, 1
        %v539 = vperm.slane %v512, 3
        %v542 = vperm.slane %v538, 1
        %v543 = vperm.slane %v539, 1
        %v544 = vsub.f32 %v520, %v542
        %v545 = vsub.f32 %v520, %v543
        %v546 = vsub.f32 %v525, %v542
        %v547 = vsub.f32 %v525, %v543
        %v548 = vsub.f32 %v530, %v542
        %v549 = vsub.f32 %v530, %v543
        %v550 = vsub.f32 %v535, %v542
        %v551 = vsub.f32 %v535, %v543
        %v552 = vand.u32 2147483647, %v544
        %v553 = vand.u32 2147483647, %v545
        %v554 = vand.u32 2147483647, %v546
        %v555 = vand.u32 2147483647, %v547
        %v556 = vand.u32 2147483647, %v548
        %v557 = vand.u32 2147483647, %v549
        %v558 = vand.u32 2147483647, %v550
        %v559 = vand.u32 2147483647, %v551
        %v560 = vsub.f32 1.0, %v552
        %v561 = vsub.f32 1.0, %v553
        %v562 = vsub.f32 1.0, %v554
        %v563 = vsub.f32 1.0, %v555
        %v564 = vsub.f32 1.0, %v556
        %v565 = vsub.f32 1.0, %v557
        %v566 = vsub.f32 1.0, %v558
        %v567 = vsub.f32 1.0, %v559
        %v568 = vmax.f32 %v560, 0.0
        %v569 = vmax.f32 %v561, 0.0
        %v570 = vmax.f32 %v562, 0.0
        %v571 = vmax.f32 %v563, 0.0
        %v572 = vmax.f32 %v564, 0.0
        %v573 = vmax.f32 %v565, 0.0
        %v574 = vmax.f32 %v566, 0.0
        %v575 = vmax.f32 %v567, 0.0
        %576 = vset.pattern.permute.xlu0 1
        %577 = vperm.xlu0 %576, %v513
        %v578 = vpop.permute.xlu0 %577
        %580 = vset.pattern.permute.xlu0 1
        %581 = vperm.xlu0 %580, %v514
        %v582 = vpop.permute.xlu0 %581
        %584 = vset.pattern.permute.xlu0 1
        %585 = vperm.xlu0 %584, %v515
        %v586 = vpop.permute.xlu0 %585
        %588 = vset.pattern.permute.xlu0 1
        %589 = vperm.xlu0 %588, %v516
        %v590 = vpop.permute.xlu0 %589
        %v592 = vperm.slane %v512, 0
        %v593 = vperm.slane %v512, 2
        %v596 = vperm.slane %v592, 0
        %v597 = vperm.slane %v593, 0
        %v598 = vsub.f32 %v578, %v596
        %v599 = vsub.f32 %v578, %v597
        %v600 = vsub.f32 %v582, %v596
        %v601 = vsub.f32 %v582, %v597
        %v602 = vsub.f32 %v586, %v596
        %v603 = vsub.f32 %v586, %v597
        %v604 = vsub.f32 %v590, %v596
        %v605 = vsub.f32 %v590, %v597
        %v606 = vand.u32 2147483647, %v598
        %v607 = vand.u32 2147483647, %v599
        %v608 = vand.u32 2147483647, %v600
        %v609 = vand.u32 2147483647, %v601
        %v610 = vand.u32 2147483647, %v602
        %v611 = vand.u32 2147483647, %v603
        %v612 = vand.u32 2147483647, %v604
        %v613 = vand.u32 2147483647, %v605
        %v614 = vsub.f32 1.0, %v606
        %v615 = vsub.f32 1.0, %v607
        %v616 = vsub.f32 1.0, %v608
        %v617 = vsub.f32 1.0, %v609
        %v618 = vsub.f32 1.0, %v610
        %v619 = vsub.f32 1.0, %v611
        %v620 = vsub.f32 1.0, %v612
        %v621 = vsub.f32 1.0, %v613
        %v622 = vmax.f32 %v614, 0.0
        %v623 = vmax.f32 %v615, 0.0
        %v624 = vmax.f32 %v616, 0.0
        %v625 = vmax.f32 %v617, 0.0
        %v626 = vmax.f32 %v618, 0.0
        %v627 = vmax.f32 %v619, 0.0
        %v628 = vmax.f32 %v620, 0.0
        %v629 = vmax.f32 %v621, 0.0
        %v630 = vmul.f32 %v568, %v622
        %v631 = vmul.f32 %v569, %v623
        %v632 = vmul.f32 %v570, %v624
        %v633 = vmul.f32 %v571, %v625
        %v634 = vmul.f32 %v572, %v626
        %v635 = vmul.f32 %v573, %v627
        %v636 = vmul.f32 %v574, %v628
        %v637 = vmul.f32 %v575, %v629
        %v638 = vpack.c.bf16 %v632, %v630
        %v639 = vpack.c.bf16 %v633, %v631
        %v640 = vpack.c.bf16 %v636, %v634
        %v641 = vpack.c.bf16 %v637, %v635
        %v642 = vld [vmem:[%s400] sm:$0xff]
        %v643 = vld [vmem:[%s400 + $0x8] sm:$0xff]
        %v644 = vld [vmem:[%s400 + $0x10] sm:$0xff]
        %v645 = vld [vmem:[%s400 + $0x18] sm:$0xff]
        %v646 = vld [vmem:[%s400 + $0x20] sm:$0xff]
        %v647 = vld [vmem:[%s400 + $0x28] sm:$0xff]
        %v648 = vld [vmem:[%s400 + $0x30] sm:$0xff]
        %v649 = vld [vmem:[%s400 + $0x38] sm:$0xff]
        %v650 = vpack.c.bf16 %v644, %v642
        %v651 = vpack.c.bf16 %v645, %v643
        %v652 = vpack.c.bf16 %v648, %v646
        %v653 = vpack.c.bf16 %v649, %v647
        %654 = vmatpush.bf16.xpose.msra.mxu0 0
        %655 = vmatpush.bf16.xpose.msra.mxu0 0
        %656 = vmatpush.bf16.xpose.msra.mxu0 0
        %657 = vmatpush.bf16.xpose.msra.mxu0 0
        %658 = vmatpush.bf16.xpose.msra.mxu0 0
        %659 = vmatpush.bf16.xpose.msra.mxu0 0
        %660 = vmatpush.bf16.xpose.msra.mxu0 %v652
        %661 = vmatpush.bf16.xpose.msra.mxu0 %v650
        %662 = vmatmul.bf16.gmra.mxu0 %v638
        %v663 = vpop.f32.mrf.mxu0
        %v664 = vadd.f32 0.0, %v663
        %v665 = vpop.f32.mrf.mxu0
        %v666 = vadd.f32 0.0, %v665
        %667 = vmatmul.bf16.gmra.mxu0 %v640
        %v668 = vpop.f32.mrf.mxu0
        %v669 = vadd.f32 0.0, %v668
        %v670 = vpop.f32.mrf.mxu0
        %v671 = vadd.f32 0.0, %v670
        %672 = vdwg.mxu0
        %673 = vmatpush.bf16.xpose.msra.mxu0 0
        %674 = vmatpush.bf16.xpose.msra.mxu0 0
        %675 = vmatpush.bf16.xpose.msra.mxu0 0
        %676 = vmatpush.bf16.xpose.msra.mxu0 0
        %677 = vmatpush.bf16.xpose.msra.mxu0 0
        %678 = vmatpush.bf16.xpose.msra.mxu0 0
        %679 = vmatpush.bf16.xpose.msra.mxu0 %v653
        %680 = vmatpush.bf16.xpose.msra.mxu0 %v651
        %681 = vmatmul.bf16.gmra.mxu0 %v639
        %v682 = vpop.f32.mrf.mxu0
        %v683 = vadd.f32 %v664, %v682
        %v684 = vpop.f32.mrf.mxu0
        %v685 = vadd.f32 %v666, %v684
        %686 = vmatmul.bf16.gmra.mxu0 %v641
        %v687 = vpop.f32.mrf.mxu0
        %v688 = vadd.f32 %v669, %v687
        %v689 = vpop.f32.mrf.mxu0
        %v690 = vadd.f32 %v671, %v689
        %691 = vdwg.mxu0
        %v692 = vpack.c.bf16 %v685, %v683
        %v693 = vpack.c.bf16 %v690, %v688
        %v694 = vld [vmem:[%s410] sm:$0xff]
        %v695 = vld [vmem:[%s410 + $0x8] sm:$0xff]
        %v696 = vld [vmem:[%s410 + $0x10] sm:$0xff]
        %v697 = vld [vmem:[%s410 + $0x18] sm:$0xff]
        %v698 = vld [vmem:[%s410 + $0x20] sm:$0xff]
        %v699 = vld [vmem:[%s410 + $0x28] sm:$0xff]
        %v700 = vld [vmem:[%s410 + $0x30] sm:$0xff]
        %v701 = vld [vmem:[%s410 + $0x38] sm:$0xff]
        %v702 = vpack.c.bf16 %v696, %v694
        %v703 = vpack.c.bf16 %v697, %v695
        %v704 = vpack.c.bf16 %v700, %v698
        %v705 = vpack.c.bf16 %v701, %v699
        %706 = vmatpush.bf16.xpose.msra.mxu0 0
        %707 = vmatpush.bf16.xpose.msra.mxu0 0
        %708 = vmatpush.bf16.xpose.msra.mxu0 0
        %709 = vmatpush.bf16.xpose.msra.mxu0 0
        %710 = vmatpush.bf16.xpose.msra.mxu0 0
        %711 = vmatpush.bf16.xpose.msra.mxu0 0
        %712 = vmatpush.bf16.xpose.msra.mxu0 %v704
        %713 = vmatpush.bf16.xpose.msra.mxu0 %v702
        %714 = vmatmul.bf16.gmra.mxu0 %v638
        %v715 = vpop.f32.mrf.mxu0
        %v716 = vadd.f32 0.0, %v715
        %v717 = vpop.f32.mrf.mxu0
        %v718 = vadd.f32 0.0, %v717
        %719 = vmatmul.bf16.gmra.mxu0 %v640
        %v720 = vpop.f32.mrf.mxu0
        %v721 = vadd.f32 0.0, %v720
        %v722 = vpop.f32.mrf.mxu0
        %v723 = vadd.f32 0.0, %v722
        %724 = vdwg.mxu0
        %725 = vmatpush.bf16.xpose.msra.mxu0 0
        %726 = vmatpush.bf16.xpose.msra.mxu0 0
        %727 = vmatpush.bf16.xpose.msra.mxu0 0
        %728 = vmatpush.bf16.xpose.msra.mxu0 0
        %729 = vmatpush.bf16.xpose.msra.mxu0 0
        %730 = vmatpush.bf16.xpose.msra.mxu0 0
        %731 = vmatpush.bf16.xpose.msra.mxu0 %v705
        %732 = vmatpush.bf16.xpose.msra.mxu0 %v703
        %733 = vmatmul.bf16.gmra.mxu0 %v639
        %v734 = vpop.f32.mrf.mxu0
        %v735 = vadd.f32 %v716, %v734
        %v736 = vpop.f32.mrf.mxu0
        %v737 = vadd.f32 %v718, %v736
        %738 = vmatmul.bf16.gmra.mxu0 %v641
        %v739 = vpop.f32.mrf.mxu0
        %v740 = vadd.f32 %v721, %v739
        %v741 = vpop.f32.mrf.mxu0
        %v742 = vadd.f32 %v723, %v741
        %743 = vdwg.mxu0
        %v744 = vpack.c.bf16 %v737, %v735
        %v745 = vpack.c.bf16 %v742, %v740
        %v750 = vunpack.c.l.b16 %v500
        %v751 = vunpack.c.l.b16 %v501
        %v752 = vunpack.c.l.b16 %v502
        %v753 = vunpack.c.l.b16 %v503
        %v754 = vpack.c.b16 %v751, %v750
        %v755 = vpack.c.b16 %v753, %v752
        %vm758 = vcmask 261120
        %v760 = vsel %vm758, %v744, 0
        %v763 = vsel %vm758, %v745, 0
        %765 = vmatpush.bf16.msra.mxu0 0
        %766 = vmatpush.bf16.msra.mxu0 0
        %767 = vmatpush.bf16.msra.mxu0 0
        %768 = vmatpush.bf16.msra.mxu0 0
        %769 = vmatpush.bf16.msra.mxu0 0
        %770 = vmatpush.bf16.msra.mxu0 0
        %771 = vmatpush.bf16.msra.mxu0 %v755
        %772 = vmatpush.bf16.msra.mxu0 %v754
        %773 = vmatmul.bf16.gmra.mxu0 %v760
        %v774 = vpop.f32.mrf.mxu0
        %v775 = vadd.f32 0.0, %v774
        %v776 = vpop.f32.mrf.mxu0
        %v777 = vadd.f32 0.0, %v776
        %778 = vmatmul.bf16.gmra.mxu0 %v763
        %v779 = vpop.f32.mrf.mxu0
        %v780 = vadd.f32 0.0, %v779
        %v781 = vpop.f32.mrf.mxu0
        %v782 = vadd.f32 0.0, %v781
        %783 = vdwg.mxu0
        %v788 = vunpack.c.l.b16 %v496
        %v789 = vunpack.c.l.b16 %v497
        %v790 = vunpack.c.l.b16 %v498
        %v791 = vunpack.c.l.b16 %v499
        %v792 = vpack.c.b16 %v789, %v788
        %v793 = vpack.c.b16 %v791, %v790
        %v797 = vsel %vm758, %v692, 0
        %v800 = vsel %vm758, %v693, 0
        %802 = vmatpush.bf16.msra.mxu0 0
        %803 = vmatpush.bf16.msra.mxu0 0
        %804 = vmatpush.bf16.msra.mxu0 0
        %805 = vmatpush.bf16.msra.mxu0 0
        %806 = vmatpush.bf16.msra.mxu0 0
        %807 = vmatpush.bf16.msra.mxu0 0
        %808 = vmatpush.bf16.msra.mxu0 %v793
        %809 = vmatpush.bf16.msra.mxu0 %v792
        %810 = vmatmul.bf16.gmra.mxu0 %v797
        %v811 = vpop.f32.mrf.mxu0
        %v812 = vadd.f32 %v775, %v811
        %v813 = vpop.f32.mrf.mxu0
        %v814 = vadd.f32 %v777, %v813
        %815 = vmatmul.bf16.gmra.mxu0 %v800
        %v816 = vpop.f32.mrf.mxu0
        %v817 = vadd.f32 %v780, %v816
        %v818 = vpop.f32.mrf.mxu0
        %v819 = vadd.f32 %v782, %v818
        %820 = vdwg.mxu0
        %v821 = vld [vmem:[%s2] sm:$0x3]
        %v822 = vmul.f32 %v492, 7.0
        %v823 = vmul.f32 %v493, 7.0
        %v824 = vmul.f32 %v494, 7.0
        %v825 = vmul.f32 %v495, 7.0
        %827 = vset.pattern.permute.xlu0 0
        %828 = vperm.xlu0 %827, %v822
        %v829 = vpop.permute.xlu0 %828
        %832 = vset.pattern.permute.xlu0 0
        %833 = vperm.xlu0 %832, %v823
        %v834 = vpop.permute.xlu0 %833
        %837 = vset.pattern.permute.xlu0 0
        %838 = vperm.xlu0 %837, %v824
        %v839 = vpop.permute.xlu0 %838
        %842 = vset.pattern.permute.xlu0 0
        %843 = vperm.xlu0 %842, %v825
        %v844 = vpop.permute.xlu0 %843
        %v846 = vperm.slane %v821, 1
        %v847 = vsub.f32 %v829, %v846
        %v848 = vsub.f32 %v834, %v846
        %v849 = vsub.f32 %v839, %v846
        %v850 = vsub.f32 %v844, %v846
        %v851 = vand.u32 2147483647, %v847
        %v852 = vand.u32 2147483647, %v848
        %v853 = vand.u32 2147483647, %v849
        %v854 = vand.u32 2147483647, %v850
        %v855 = vsub.f32 1.0, %v851
        %v856 = vsub.f32 1.0, %v852
        %v857 = vsub.f32 1.0, %v853
        %v858 = vsub.f32 1.0, %v854
        %v859 = vmax.f32 %v855, 0.0
        %v860 = vmax.f32 %v856, 0.0
        %v861 = vmax.f32 %v857, 0.0
        %v862 = vmax.f32 %v858, 0.0
        %863 = vset.pattern.permute.xlu0 1
        %864 = vperm.xlu0 %863, %v822
        %v865 = vpop.permute.xlu0 %864
        %867 = vset.pattern.permute.xlu0 1
        %868 = vperm.xlu0 %867, %v823
        %v869 = vpop.permute.xlu0 %868
        %871 = vset.pattern.permute.xlu0 1
        %872 = vperm.xlu0 %871, %v824
        %v873 = vpop.permute.xlu0 %872
        %875 = vset.pattern.permute.xlu0 1
        %876 = vperm.xlu0 %875, %v825
        %v877 = vpop.permute.xlu0 %876
        %v879 = vperm.slane %v821, 0
        %v880 = vsub.f32 %v865, %v879
        %v881 = vsub.f32 %v869, %v879
        %v882 = vsub.f32 %v873, %v879
        %v883 = vsub.f32 %v877, %v879
        %v884 = vand.u32 2147483647, %v880
        %v885 = vand.u32 2147483647, %v881
        %v886 = vand.u32 2147483647, %v882
        %v887 = vand.u32 2147483647, %v883
        %v888 = vsub.f32 1.0, %v884
        %v889 = vsub.f32 1.0, %v885
        %v890 = vsub.f32 1.0, %v886
        %v891 = vsub.f32 1.0, %v887
        %v892 = vmax.f32 %v888, 0.0
        %v893 = vmax.f32 %v889, 0.0
        %v894 = vmax.f32 %v890, 0.0
        %v895 = vmax.f32 %v891, 0.0
        %v896 = vmul.f32 %v859, %v892
        %v897 = vmul.f32 %v860, %v893
        %v898 = vmul.f32 %v861, %v894
        %v899 = vmul.f32 %v862, %v895
        %v900 = vpack.c.bf16 %v897, %v896
        %v901 = vpack.c.bf16 %v899, %v898
        %v902 = vld [vmem:[%s490] sm:$0xff]
        %v903 = vld [vmem:[%s490 + $0x8] sm:$0xff]
        %v904 = vld [vmem:[%s490 + $0x10] sm:$0xff]
        %v905 = vld [vmem:[%s490 + $0x18] sm:$0xff]
        %v906 = vpack.c.bf16 %v903, %v902
        %v907 = vpack.c.bf16 %v905, %v904
        %vm908 = vcmask 523264
        %v910 = vsel %vm908, %v900, 0
        %v913 = vsel %vm908, %v901, 0
        %v916 = vsel %vm908, %v906, 0
        %v919 = vsel %vm908, %v907, 0
        %921 = vmatpush.bf16.xpose.msra.mxu0 0
        %922 = vmatpush.bf16.xpose.msra.mxu0 0
        %923 = vmatpush.bf16.xpose.msra.mxu0 0
        %924 = vmatpush.bf16.xpose.msra.mxu0 0
        %925 = vmatpush.bf16.xpose.msra.mxu0 0
        %926 = vmatpush.bf16.xpose.msra.mxu0 0
        %927 = vmatpush.bf16.xpose.msra.mxu0 %v919
        %928 = vmatpush.bf16.xpose.msra.mxu0 %v916
        %929 = vmatmul.bf16.gmra.mxu0 %v910
        %v930 = vpop.f32.mrf.mxu0
        %v931 = vadd.f32 0.0, %v930
        %v932 = vpop.f32.mrf.mxu0
        %v933 = vadd.f32 0.0, %v932
        %934 = vmatmul.bf16.gmra.mxu0 %v913
        %v935 = vpop.f32.mrf.mxu0
        %v936 = vadd.f32 0.0, %v935
        %v937 = vpop.f32.mrf.mxu0
        %v938 = vadd.f32 0.0, %v937
        %939 = vdwg.mxu0
        %v940 = vpack.c.bf16 %v933, %v931
        %v941 = vpack.c.bf16 %v938, %v936
        %v946 = vunpack.c.l.b16 %v504
        %v947 = vunpack.c.l.b16 %v505
        %v948 = vunpack.c.l.b16 %v506
        %v949 = vunpack.c.l.b16 %v507
        %v950 = vpack.c.b16 %v947, %v946
        %v951 = vpack.c.b16 %v949, %v948
        %v955 = vsel %vm758, %v940, 0
        %v958 = vsel %vm758, %v941, 0
        %960 = vmatpush.bf16.msra.mxu0 0
        %961 = vmatpush.bf16.msra.mxu0 0
        %962 = vmatpush.bf16.msra.mxu0 0
        %963 = vmatpush.bf16.msra.mxu0 0
        %964 = vmatpush.bf16.msra.mxu0 0
        %965 = vmatpush.bf16.msra.mxu0 0
        %966 = vmatpush.bf16.msra.mxu0 %v951
        %967 = vmatpush.bf16.msra.mxu0 %v950
        %968 = vmatmul.bf16.gmra.mxu0 %v955
        %v969 = vpop.f32.mrf.mxu0
        %v970 = vadd.f32 0.0, %v969
        %v971 = vpop.f32.mrf.mxu0
        %v972 = vadd.f32 0.0, %v971
        %973 = vmatmul.bf16.gmra.mxu0 %v958
        %v974 = vpop.f32.mrf.mxu0
        %v975 = vadd.f32 0.0, %v974
        %v976 = vpop.f32.mrf.mxu0
        %v977 = vadd.f32 0.0, %v976
        %978 = vdwg.mxu0
        %v979 = vadd.f32 %v812, %v970
        %v980 = vadd.f32 %v814, %v972
        %v981 = vadd.f32 %v817, %v975
        %v982 = vadd.f32 %v819, %v977
        %v983 = vld [vmem:[%s420] sm:$0xff]
        %v984 = vld [vmem:[%s420 + $0x8] sm:$0xff]
        %v985 = vld [vmem:[%s420 + $0x10] sm:$0xff]
        %v986 = vld [vmem:[%s420 + $0x18] sm:$0xff]
        %v987 = vpack.c.bf16 %v984, %v983
        %v988 = vpack.c.bf16 %v986, %v985
        %v990 = vsel %vm908, %v987, 0
        %v993 = vsel %vm908, %v988, 0
        %995 = vmatpush.bf16.xpose.msra.mxu0 0
        %996 = vmatpush.bf16.xpose.msra.mxu0 0
        %997 = vmatpush.bf16.xpose.msra.mxu0 0
        %998 = vmatpush.bf16.xpose.msra.mxu0 0
        %999 = vmatpush.bf16.xpose.msra.mxu0 0
        %1000 = vmatpush.bf16.xpose.msra.mxu0 0
        %1001 = vmatpush.bf16.xpose.msra.mxu0 %v993
        %1002 = vmatpush.bf16.xpose.msra.mxu0 %v990
        %1003 = vmatmul.bf16.gmra.mxu0 %v910
        %v1004 = vpop.f32.mrf.mxu0
        %v1005 = vadd.f32 0.0, %v1004
        %v1006 = vpop.f32.mrf.mxu0
        %v1007 = vadd.f32 0.0, %v1006
        %1008 = vmatmul.bf16.gmra.mxu0 %v913
        %v1009 = vpop.f32.mrf.mxu0
        %v1010 = vadd.f32 0.0, %v1009
        %v1011 = vpop.f32.mrf.mxu0
        %v1012 = vadd.f32 0.0, %v1011
        %1013 = vdwg.mxu0
        %v1014 = vpack.c.bf16 %v1007, %v1005
        %v1015 = vpack.c.bf16 %v1012, %v1010
        %v1020 = vunpack.c.l.b16 %v508
        %v1021 = vunpack.c.l.b16 %v509
        %v1022 = vunpack.c.l.b16 %v510
        %v1023 = vunpack.c.l.b16 %v511
        %v1024 = vpack.c.b16 %v1021, %v1020
        %v1025 = vpack.c.b16 %v1023, %v1022
        %v1029 = vsel %vm758, %v1014, 0
        %v1032 = vsel %vm758, %v1015, 0
        %1034 = vmatpush.bf16.msra.mxu0 0
        %1035 = vmatpush.bf16.msra.mxu0 0
        %1036 = vmatpush.bf16.msra.mxu0 0
        %1037 = vmatpush.bf16.msra.mxu0 0
        %1038 = vmatpush.bf16.msra.mxu0 0
        %1039 = vmatpush.bf16.msra.mxu0 0
        %1040 = vmatpush.bf16.msra.mxu0 %v1025
        %1041 = vmatpush.bf16.msra.mxu0 %v1024
        %1042 = vmatmul.bf16.gmra.mxu0 %v1029
        %v1043 = vpop.f32.mrf.mxu0
        %v1044 = vadd.f32 0.0, %v1043
        %v1045 = vpop.f32.mrf.mxu0
        %v1046 = vadd.f32 0.0, %v1045
        %1047 = vmatmul.bf16.gmra.mxu0 %v1032
        %v1048 = vpop.f32.mrf.mxu0
        %v1049 = vadd.f32 0.0, %v1048
        %v1050 = vpop.f32.mrf.mxu0
        %v1051 = vadd.f32 0.0, %v1050
        %1052 = vdwg.mxu0
        %v1053 = vadd.f32 %v979, %v1044
        %v1054 = vadd.f32 %v980, %v1046
        %v1055 = vadd.f32 %v981, %v1049
        %v1056 = vadd.f32 %v982, %v1051
        %v1057 = vld [vmem:[%s8] sm:$0x1]
        %v1059 = vperm.slane %v1057, 0
        %v1061 = vadd.f32 %v1053, %v1059
        %v1062 = vadd.f32 %v1054, %v1059
        %v1063 = vadd.f32 %v1055, %v1059
        %v1064 = vadd.f32 %v1056, %v1059
        %1065 = vst [vmem:[%s480] sm:$0xff] %v1061
        %1066 = vst [vmem:[%s480 + $0x8] sm:$0xff] %v1062
        %1067 = vst [vmem:[%s480 + $0x10] sm:$0xff] %v1063
        %1068 = vst [vmem:[%s480 + $0x18] sm:$0xff] %v1064
        %s1069 = sand.u32 %s252, 1
        %s1070 = scalar_lea.sflag [#allocation4], %s1069
        %s1071 = sand.u32 %s252, 1
        %s1072 = smul.addr %s1071, 32
        %s1073 = scalar_lea.vmem [#allocation10], %s1072
        // Predicated region
        $region73: #{tpu_custom_call.1} parent=55 // pred_check
          %p1074 = pneg %p262
        $region74: #{tpu_custom_call.1} parent=55 // pred_check_branch
          %1076 = sbr.rel (%p1074) target = $region76
        $region75: #{tpu_custom_call.1} parent=55 // pred_region
          %1078 = vsyncadd %s1070, 0
          %s1079 = smul.addr %s30, 4
          %s1080 = smul.addr %s1079, 8
          %s1081 = scalar_lea.hbm %s9, %s1080
          %s1082 = sshll.u32 %s1073, 4
          %s1083 = int_to_ptr.vmem [resolvable:$true] %s1082
          %s1084 = sshll.u32 %s1081, 4
          %s1085 = int_to_ptr.hbm [resolvable:$true] %s1084
          %1090 = dma.vmem_to_hbm [thread:$0]  %s1083, 512, %s1085, %s1070, 128, 128, 8
        $region76: #{tpu_custom_call.1} parent=55 // pred_fallthru
          _
      $region56: #{tpu_custom_call.1} parent=5 // pred_fallthru
        _
      %p1091 = scmp.le.s32.totalorder 2, %s25
      // Predicated region
      $region77: #{tpu_custom_call.1} parent=5 // pred_check
        %p1092 = pneg %p1091
      $region78: #{tpu_custom_call.1} parent=5 // pred_check_branch
        %1094 = sbr.rel (%p1092) target = $region80
      $region79: #{tpu_custom_call.1} parent=5 // pred_region
        %s1095 = ssub.s32 %s25, 2
        // Predicated region
        $region81: #{tpu_custom_call.1} parent=79 // pred_check
          %p1096 = pneg %p268
        $region82: #{tpu_custom_call.1} parent=79 // pred_check_branch
          %1098 = sbr.rel (%p1096) target = $region84
        $region83: #{tpu_custom_call.1} parent=79 // pred_region
          %s1099 = sand.u32 %s253, 1
          %s1100 = scalar_lea.sflag [#allocation4], %s1099
          %s1101 = sand.u32 %s253, 1
          %s1102 = smul.addr %s1101, 32
          %s1103 = scalar_lea.vmem [#allocation10], %s1102
          %1105 = dma.done %s1100, 512
        $region84: #{tpu_custom_call.1} parent=79 // pred_fallthru
          _
      $region80: #{tpu_custom_call.1} parent=5 // pred_fallthru
        _
    $region6: #{tpu_custom_call.1} parent=1 // loop_footer
      %s29 = sadd.s32 1, %s25
    $region7: #{tpu_custom_call.1} parent=1 // loop_footer_branch
      %24 = sbr.rel target = $region3
    $region8: #{tpu_custom_call.1} parent=1 // loop_exit
      _
    %1106 = vsyncpa [#allocation3], 1
    %s1107 = scalar_lea.sflag [#allocation3], 1
    %1108 = vsyncpa %s1107, 1
    %1109 = vsyncpa [#allocation6], 1
    %s1110 = scalar_lea.sflag [#allocation6], 1
    %1111 = vsyncpa %s1110, 1
    %1112 = vsyncpa [#allocation9], 1
    %1113 = vsyncpa [#allocation4], 1
    %s1114 = scalar_lea.sflag [#allocation4], 1
    %1115 = vsyncpa %s1114, 1

</llo_original>
